<compile_context>
chip_gen: v7x
topology: tpu7x:2x2x1
jax: 0.10.0
libtpu: 0.0.40
codegen_flags: <defaults>
</compile_context>

<pallas_src>
import functools
import math

import jax
import jax.numpy as jnp
from jax.experimental import pallas as pl
from jax.experimental.pallas import tpu as pltpu


# -----------------------------------------------------------------------------
# Fused kernel: one MXU pass + in-kernel top-k routing + weighted combine.
# -----------------------------------------------------------------------------
def _moe_pred_kernel(x_ref, w_ref, b_ref, o_ref, *, top_k, num_experts):
    E = num_experts
    x = x_ref[...]                                         # (Bt, D) bf16
    bt = x.shape[0]

    # --- one fused MXU pass: gate logits | expert outputs ---------------------
    # bf16 @ bf16 -> f32 accumulate: a single MXU pass, explicit and
    # deterministic (no reliance on the implicit f32-default bf16 demotion).
    fused = jnp.dot(x, w_ref[...],
                    preferred_element_type=jnp.float32) + b_ref[...]   # (Bt, 2E)

    lane = jax.lax.broadcasted_iota(jnp.int32, (bt, 2 * E), 1)
    mask_val = jnp.float32(-1e30)          # finite "minus infinity" (no inf/nan edge cases)

    # --- in-kernel top-k over the gate logits ----------------------------------
    # Softmax is strictly monotonic per row, so top-k over the raw logits picks
    # the same experts (same lowest-index tie-break as torch.topk) as top-k
    # over softmax(logits); the gate softmax is skipped.
    #
    # Reference semantics (bug-faithful): the p-th selected *expert id* is
    # routed to expert p (its position in the top-k list), with weight
    # softmax(selected integer ids)[p].  ids_row stores the selected id at lane
    # E + p (all other lanes stay hugely negative), so a single masked softmax
    # over the row yields the routing weights already aligned with the
    # expert-output lanes -- no K per-row temporaries, no live denominator.
    work = jnp.where(lane < E, fused, mask_val)            # logits lanes only
    ids_row = jnp.full((bt, 2 * E), mask_val, jnp.float32)
    for p in range(top_k):
        row_max = jnp.max(work, axis=-1, keepdims=True)
        sel = jnp.min(jnp.where(work == row_max, lane, 2 * E),
                      axis=-1, keepdims=True)              # (Bt, 1) id; ties -> lowest
        ids_row = jnp.where(lane == E + p, sel.astype(jnp.float32), ids_row)
        work = jnp.where(lane == sel, mask_val, work)

    # --- routing weights = softmax over the selected integer ids ----------------
    # TODO(synk): PyTorch F.softmax rejects Long tensors; as in the reference
    # translation the ids are cast to float before the softmax.
    m = jnp.max(ids_row, axis=-1, keepdims=True)
    ew = jnp.exp(ids_row - m)                              # masked lanes underflow to 0
    denom = jnp.sum(ew, axis=-1, keepdims=True)
    route_w = ew * pl.reciprocal(denom, approx=False)      # exact: EUP/VPU have slack

    # --- weighted combine + lane-dense output row -------------------------------
    # route_w is zero on the logit lanes and on unselected expert lanes, so the
    # sum over all 2E lanes is exactly sum_p weight_p * expert_p(x).
    out = jnp.sum(route_w * fused, axis=-1)                # (Bt,)
    o_ref[...] = out.reshape(1, 1, bt).astype(o_ref.dtype)


# -----------------------------------------------------------------------------
# Tiling / VMEM heuristics (generation-aware).
# -----------------------------------------------------------------------------
def _choose_block_b(batch, d, elt_bytes):
    """Byte-targeted batch tile: ~2 MiB of x per tile (per-step overhead is
    ~0.35 us, so bigger tiles stream HBM better), rows a multiple of 16 (bf16
    sublane tile), capped at 512 rows (each live (Bt, 2E) routing intermediate
    costs ceil(Bt/8) vregs) and capped so the grid has >= 2 steps whenever B
    allows (feeds both of v7x's TensorCores)."""
    g = 16
    if batch <= 2 * g:
        return batch                                # single full-dim tile
    rows = (2 << 20) // max(1, d * elt_bytes)
    rows = min(rows, 512)
    rows = min(rows, pl.cdiv(batch, 2))
    return max(g, (rows // g) * g)


def _vmem_limit_bytes(bt, d, e, elt_bytes):
    """Scoped-VMEM request covering the double-buffered x tile, the resident
    fused weight/bias, and the output rows, with 2x headroom for compiler
    scratch / spills.  Explicit because the default scoped limit (16 MiB on
    v5e, 32 MiB on v6e/v7x) is smaller than what we can safely use, while the
    cap keeps us below v7x's 64 MiB physical VMEM."""
    need = (2 * bt * d * elt_bytes                 # x tile, double buffered
            + 2 * d * (2 * e) * elt_bytes          # fused weight (2 buffers)
            + 2 * 8 * 128 * 4                      # fused bias (padded tile)
            + 2 * max(bt, 128) * 4)                # lane-dense output rows
    try:
        phys = int(pltpu.get_tpu_info().vmem_capacity_bytes)
    except Exception:                              # conservative fallback (v7x)
        phys = 64 << 20
    return int(min(max(2 * need, 32 << 20), (3 * phys) // 4))


# -----------------------------------------------------------------------------
# MOEPred.forward — one fused pallas_call.
# -----------------------------------------------------------------------------
def moe_pred_forward(X, params, top_k, *, compute_dtype=jnp.bfloat16):
    """MOEPred.forward.  X: (B, 1, D) -> (B, 1)."""
    B, S, D = X.shape
    assert S == 1, "reference forward is only shape-consistent for seq dim == 1"
    wg, bg, we, be = params
    E = wg.shape[1]
    assert 1 <= top_k <= E

    # Fused operands: one (D, 2E) weight / (1, 2E) bias so the kernel does a
    # single MXU pass per tile (gate logits in lanes [0,E), experts in [E,2E)).
    # bf16 operands halve HBM bytes on the dominant x stream; f32 accumulate.
    # TODO(synk): ideally the producer already emits X (and the fused weight)
    # in bf16 so the casts below are no-ops instead of an extra HBM pass.
    x2 = X[:, 0, :].astype(compute_dtype)
    w_fused = jnp.concatenate([wg, we], axis=1).astype(compute_dtype)
    b_fused = jnp.concatenate([bg, be], axis=1).astype(jnp.float32)

    elt = jnp.dtype(compute_dtype).itemsize
    bt = _choose_block_b(B, D, elt)
    num_tiles = pl.cdiv(B, bt)

    # The fused weight/bias index maps are constant, so Pallas fetches them
    # once and keeps them resident; their footprint (D x 2E) is small next to
    # the x double-buffer, so single-buffering them was deliberately skipped.
    kernel = functools.partial(_moe_pred_kernel, top_k=top_k, num_experts=E)
    out = pl.pallas_call(
        kernel,
        out_shape=jax.ShapeDtypeStruct((num_tiles, 1, bt), X.dtype),
        grid=(num_tiles,),
        in_specs=[
            pl.BlockSpec((bt, D), lambda i: (i, 0)),          # x batch tile
            pl.BlockSpec((D, 2 * E), lambda i: (0, 0)),       # fused gate|expert weight
            pl.BlockSpec((1, 2 * E), lambda i: (0, 0)),       # fused gate|expert bias
        ],
        out_specs=pl.BlockSpec((1, 1, bt), lambda i: (i, 0, 0)),  # lane-dense row
        compiler_params=pltpu.CompilerParams(
            dimension_semantics=("parallel",),
            vmem_limit_bytes=_vmem_limit_bytes(bt, D, E, elt)),
    )(x2, w_fused, b_fused)

    # TODO(synk): the reference's no_grad expert_usage bookkeeping (scatter_ +
    # sum into a module buffer) is training-time state that does not affect the
    # returned tensor; it is not reproduced here.
    return out.reshape(num_tiles * bt)[:B].reshape(B, 1)


# -----------------------------------------------------------------------------
# Deterministic parameter construction (synthetic, no checkpoint).
# Each expert is Sequential(Flatten(), Linear(D, 1)); their weight columns are
# stacked into one (D, E) matrix so the kernel can fuse them into one matmul.
# NOTE: the reference puts the *same* expert_layer instance in the ModuleList
# num_experts times (shared weights); here each expert gets its own
# deterministic weights — make all columns equal to recover the shared case.
# -----------------------------------------------------------------------------
def init_params(key, D, E):
    kg, kgb, kw, kb = jax.random.split(key, 4)
    wg = 0.001 * jax.random.normal(kg, (D, E), jnp.float32)       # gate: N(0, 0.001)
    bg = (1.0 / math.sqrt(D)) * (
        2.0 * jax.random.uniform(kgb, (1, E), jnp.float32) - 1.0)
    we = (1.0 / math.sqrt(D)) * jax.random.normal(kw, (D, E), jnp.float32)
    be = 0.1 * jax.random.normal(kb, (1, E), jnp.float32)
    return wg, bg, we, be


def _reference(X, params, top_k, compute_dtype=jnp.bfloat16):
    """Pure-JAX literal translation of the PyTorch routing (sanity check),
    using the same bf16-operand / f32-accumulate matmuls as the kernel."""
    wg, bg, we, be = params
    B = X.shape[0]
    E = wg.shape[1]
    x2 = X[:, 0, :].astype(compute_dtype)
    logits = jnp.dot(x2, wg.astype(compute_dtype),
                     preferred_element_type=jnp.float32) + bg
    probs = jax.nn.softmax(logits, axis=-1)
    _, gate_scores = jax.lax.top_k(probs, top_k)                  # expert ids
    tks, tki = jax.lax.top_k(gate_scores, top_k)                  # top-k of the *ids*
    w = jax.nn.softmax(tks.astype(jnp.float32), axis=-1)
    rw = jnp.zeros((B, E), jnp.float32).at[
        jnp.arange(B)[:, None], tki].add(w)
    eo = jnp.dot(x2, we.astype(compute_dtype),
                 preferred_element_type=jnp.float32) + be         # (B, E)
    return jnp.sum(rw * eo, axis=-1, keepdims=True).astype(X.dtype)


if __name__ == "__main__":
    # Small shapes; B=48 exercises a 3-step "parallel" grid with resident weights.
    B, S, D, E, K = 48, 1, 32, 4, 2

    key = jax.random.PRNGKey(0)
    kx, kp = jax.random.split(key)
    X = jax.random.normal(kx, (B, S, D), jnp.float32)
    params = init_params(kp, D, E)

    out = jax.block_until_ready(moe_pred_forward(X, params, K))
    assert out.shape == (B, 1) and out.dtype == X.dtype

    ref = _reference(X, params, K)
    # bf16 matmul operands (f32 accumulate) in both kernel and reference.
    assert jnp.allclose(out, ref, atol=2e-2, rtol=2e-2), (out, ref)

    print("KERNEL_OK")
</pallas_src>

<mosaic_0001>
module attributes {stable_mosaic.version = 11 : i64} {
  func.func @_moe_pred_kernel(%arg0: i32, %arg1: memref<16x32xbf16, #tpu.memory_space<vmem>>, %arg2: memref<32x8xbf16, #tpu.memory_space<vmem>>, %arg3: memref<1x8xf32, #tpu.memory_space<vmem>>, %arg4: memref<1x1x16xf32, #tpu.memory_space<vmem>>) attributes {dimension_semantics = [#tpu.dimension_semantics<parallel>], iteration_bounds = array<i64: 3>, scalar_prefetch = 0 : i64, scratch_operands = 0 : i64, tpu.core_type = #tpu.core_type<tc>, window_params = [{transform_indices = @transform_0, window_bounds = array<i64: 16, 32>}, {pipeline_mode = #tpu.pipeline_mode<synchronous>, transform_indices = @transform_1, window_bounds = array<i64: 32, 8>}, {pipeline_mode = #tpu.pipeline_mode<synchronous>, transform_indices = @transform_2, window_bounds = array<i64: 1, 8>}, {transform_indices = @transform_3, window_bounds = array<i64: 1, 1, 16>}]} {
    %c0 = arith.constant 0 : index
    %c0_0 = arith.constant 0 : index
    %0 = vector.load %arg1[%c0, %c0_0] : memref<16x32xbf16, #tpu.memory_space<vmem>>, vector<16x32xbf16>
    %c0_1 = arith.constant 0 : index
    %c0_2 = arith.constant 0 : index
    %1 = vector.load %arg2[%c0_1, %c0_2] : memref<32x8xbf16, #tpu.memory_space<vmem>>, vector<32x8xbf16>
    %cst = arith.constant dense<0.000000e+00> : vector<16x8xf32>
    %2 = tpu.matmul %0, %1, %cst {dimension_numbers = #tpu.dot_dimension_numbers<[1], [0], [0], [1], [0, 0, 1, 1], [], []>} : vector<16x32xbf16>, vector<32x8xbf16>, vector<16x8xf32> -> vector<16x8xf32>
    %c0_3 = arith.constant 0 : index
    %c0_4 = arith.constant 0 : index
    %3 = vector.load %arg3[%c0_3, %c0_4] : memref<1x8xf32, #tpu.memory_space<vmem>>, vector<1x8xf32>
    %4 = vector.broadcast %3 : vector<1x8xf32> to vector<16x8xf32>
    %5 = arith.addf %2, %4 : vector<16x8xf32>
    %6 = tpu.iota {dimensions = array<i32: 1>} : vector<16x8xi32>
    %c4_i32 = arith.constant 4 : i32
    %7 = vector.broadcast %c4_i32 : i32 to vector<16x8xi32>
    %8 = arith.cmpi slt, %6, %7 : vector<16x8xi32>
    %cst_5 = arith.constant -1.000000e+30 : f32
    %9 = vector.broadcast %cst_5 : f32 to vector<16x8xf32>
    %10 = arith.select %8, %5, %9 : vector<16x8xi1>, vector<16x8xf32>
    %cst_6 = arith.constant -1.000000e+30 : f32
    %11 = vector.broadcast %cst_6 : f32 to vector<16x8xf32>
    %cst_7 = arith.constant dense<0xFF800000> : vector<16xf32>
    %12 = vector.multi_reduction <maximumf>, %10, %cst_7 [1] : vector<16x8xf32> to vector<16xf32>
    %13 = vector.shape_cast %12 : vector<16xf32> to vector<16x1xf32>
    %14 = vector.broadcast %13 : vector<16x1xf32> to vector<16x8xf32>
    %15 = arith.cmpf oeq, %10, %14 : vector<16x8xf32>
    %c8_i32 = arith.constant 8 : i32
    %16 = vector.broadcast %c8_i32 : i32 to vector<16x8xi32>
    %17 = arith.select %15, %6, %16 : vector<16x8xi1>, vector<16x8xi32>
    %cst_8 = arith.constant dense<2147483647> : vector<16xi32>
    %18 = vector.multi_reduction <minsi>, %17, %cst_8 [1] : vector<16x8xi32> to vector<16xi32>
    %19 = vector.shape_cast %18 : vector<16xi32> to vector<16x1xi32>
    %c4_i32_9 = arith.constant 4 : i32
    %20 = vector.broadcast %c4_i32_9 : i32 to vector<16x8xi32>
    %21 = arith.cmpi eq, %6, %20 : vector<16x8xi32>
    %22 = arith.sitofp %19 : vector<16x1xi32> to vector<16x1xf32>
    %23 = vector.shape_cast %22 : vector<16x1xf32> to vector<16x1xf32>
    %24 = vector.broadcast %23 : vector<16x1xf32> to vector<16x8xf32>
    %25 = arith.select %21, %24, %11 : vector<16x8xi1>, vector<16x8xf32>
    %26 = vector.broadcast %19 : vector<16x1xi32> to vector<16x8xi32>
    %27 = arith.cmpi eq, %6, %26 : vector<16x8xi32>
    %cst_10 = arith.constant -1.000000e+30 : f32
    %28 = vector.broadcast %cst_10 : f32 to vector<16x8xf32>
    %29 = arith.select %27, %28, %10 : vector<16x8xi1>, vector<16x8xf32>
    %cst_11 = arith.constant dense<0xFF800000> : vector<16xf32>
    %30 = vector.multi_reduction <maximumf>, %29, %cst_11 [1] : vector<16x8xf32> to vector<16xf32>
    %31 = vector.shape_cast %30 : vector<16xf32> to vector<16x1xf32>
    %32 = vector.broadcast %31 : vector<16x1xf32> to vector<16x8xf32>
    %33 = arith.cmpf oeq, %29, %32 : vector<16x8xf32>
    %c8_i32_12 = arith.constant 8 : i32
    %34 = vector.broadcast %c8_i32_12 : i32 to vector<16x8xi32>
    %35 = arith.select %33, %6, %34 : vector<16x8xi1>, vector<16x8xi32>
    %cst_13 = arith.constant dense<2147483647> : vector<16xi32>
    %36 = vector.multi_reduction <minsi>, %35, %cst_13 [1] : vector<16x8xi32> to vector<16xi32>
    %37 = vector.shape_cast %36 : vector<16xi32> to vector<16x1xi32>
    %c5_i32 = arith.constant 5 : i32
    %38 = vector.broadcast %c5_i32 : i32 to vector<16x8xi32>
    %39 = arith.cmpi eq, %6, %38 : vector<16x8xi32>
    %40 = arith.sitofp %37 : vector<16x1xi32> to vector<16x1xf32>
    %41 = vector.shape_cast %40 : vector<16x1xf32> to vector<16x1xf32>
    %42 = vector.broadcast %41 : vector<16x1xf32> to vector<16x8xf32>
    %43 = arith.select %39, %42, %25 : vector<16x8xi1>, vector<16x8xf32>
    %cst_14 = arith.constant dense<0xFF800000> : vector<16xf32>
    %44 = vector.multi_reduction <maximumf>, %43, %cst_14 [1] : vector<16x8xf32> to vector<16xf32>
    %45 = vector.shape_cast %44 : vector<16xf32> to vector<16x1xf32>
    %46 = vector.broadcast %45 : vector<16x1xf32> to vector<16x8xf32>
    %47 = arith.subf %43, %46 : vector<16x8xf32>
    %48 = math.exp %47 : vector<16x8xf32>
    %cst_15 = arith.constant dense<0.000000e+00> : vector<16xf32>
    %49 = vector.multi_reduction <add>, %48, %cst_15 [1] : vector<16x8xf32> to vector<16xf32>
    %50 = vector.shape_cast %49 : vector<16xf32> to vector<16x1xf32>
    %51 = tpu.reciprocal %50 : vector<16x1xf32> -> vector<16x1xf32>
    %52 = vector.broadcast %51 : vector<16x1xf32> to vector<16x8xf32>
    %53 = arith.mulf %48, %52 : vector<16x8xf32>
    %54 = arith.mulf %53, %5 : vector<16x8xf32>
    %cst_16 = arith.constant dense<0.000000e+00> : vector<16xf32>
    %55 = vector.multi_reduction <add>, %54, %cst_16 [1] : vector<16x8xf32> to vector<16xf32>
    %56 = vector.shape_cast %55 : vector<16xf32> to vector<1x1x16xf32>
    %c0_17 = arith.constant 0 : index
    %c0_18 = arith.constant 0 : index
    %c0_19 = arith.constant 0 : index
    %57 = vector.load %arg4[%c0_17, %c0_18, %c0_19] : memref<1x1x16xf32, #tpu.memory_space<vmem>>, vector<1x1x16xf32>
    tpu.vector_store %arg4[%c0_17, %c0_18, %c0_19], %56 {strides = array<i32>} : memref<1x1x16xf32, #tpu.memory_space<vmem>>, vector<1x1x16xf32>,
    return
  }
  func.func @transform_0(%arg0: i32) -> (i32, i32) {
    %c0_i32 = arith.constant 0 : i32
    %c0_i32_0 = arith.constant 0 : i32
    return %arg0, %c0_i32 : i32, i32
  }
  func.func @transform_1(%arg0: i32) -> (i32, i32) {
    %c0_i32 = arith.constant 0 : i32
    %c0_i32_0 = arith.constant 0 : i32
    %c0_i32_1 = arith.constant 0 : i32
    return %c0_i32, %c0_i32_0 : i32, i32
  }
  func.func @transform_2(%arg0: i32) -> (i32, i32) {
    %c0_i32 = arith.constant 0 : i32
    %c0_i32_0 = arith.constant 0 : i32
    %c0_i32_1 = arith.constant 0 : i32
    return %c0_i32, %c0_i32_0 : i32, i32
  }
  func.func @transform_3(%arg0: i32) -> (i32, i32, i32) {
    %c0_i32 = arith.constant 0 : i32
    %c0_i32_0 = arith.constant 0 : i32
    %c0_i32_1 = arith.constant 0 : i32
    return %arg0, %c0_i32, %c0_i32_0 : i32, i32, i32
  }
}

</mosaic_0001>

<llo_original>
// kernel: tpu_custom_call.1
$region0: #{tpu_custom_call.1}
  #allocation0 [shape = 'u32[]', space=smem, size = 0x4, offset = 0x4, fixed_abs, tag = 'smem constant byte address 0x4 - core index']
  #allocation1 [shape = 'u32[144,128]{1,0:T(1,128)}', space=vmem, size = 0x12000, scoped, tag = 'internal scratch']
  %s0 = inlined_call_operand.vmem [shape: bf16[48,32], index: 0, kind: input, shape index: {}]
  %s1 = inlined_call_operand.vmem [shape: bf16[32,8], index: 1, kind: input, shape index: {}]
  %s2 = inlined_call_operand.vmem [shape: f32[1,8], index: 2, kind: input, shape index: {}]
  %s3 = inlined_call_operand.hbm [shape: f32[3,1,16], index: 3, kind: output, shape index: {}]
  %s4 = sld [smem:[#allocation0]]
  $region45: #{tpu_custom_call.1} parent=0
    _
  %s6 = ssub.s32 1, %s4
  %s7 = scalar_select 0, %s6, %s4
  $region1: #{tpu_custom_call.1} parent=0
    #allocation2 [shape = 'u8[1024]{0}', space=vmem, size = 0x400, scoped, tag = 'output window, operand 0']
    #allocation3 [shape = 's32[2]{0}', space=sflag, size = 0x8, scoped, tag = 'scoped memory for tpu_custom_call.1']
    %8 = vsyncpa [#allocation3], 0
    %s9 = scalar_lea.sflag [#allocation3], 1
    %10 = vsyncpa %s9, 0
    loop: start=0, step=1, limit=5
    $region2: #{tpu_custom_call.1} parent=1 // loop_pre_header
      _
    $region3: #{tpu_custom_call.1} parent=1 // loop_header
      %s12 = sphi 0, %s16
      %p13 = scmp.ge.s32.totalorder %s12, 5
      %s22 = sphi 0, %s24
      %s25 = sphi 0, %s22
      %s26 = sphi 0, %s25
      %s42 = sphi 0, %s26
      %s46 = sphi 0, %s46
      %s48 = sphi 0, %s46
      %s49 = sphi 0, %s48
      %s63 = sphi 0, %s49
      %s67 = sphi 0, %s67
      %s69 = sphi 0, %s67
      %s70 = sphi 0, %s69
      %s84 = sphi 0, %s70
      %s90 = sphi 0, %s92
      %s93 = sphi 0, %s90
      %s94 = sphi 0, %s93
      %s110 = sphi 0, %s94
    $region4: #{tpu_custom_call.1} parent=1 // loop_header_branch
      %15 = sbr.rel (%p13) target = $region8
    $region5: #{tpu_custom_call.1} parent=1 // loop_body
      %s17 = ssub.s32 %s12, 1
      %s18 = ssub.s32 %s12, 2
      %s19 = sadd.s32 %s12, 1
      %s20 = ssub.s32 %s12, %s19
      %p21 = scmp.eq.s32.totalorder %s20, 0
      %s23 = sadd.s32 %s22, 1
      %s24 = scalar_select %p21, %s22, %s23
      %p27 = pneg %p21
      %p28 = scmp.eq.s32.totalorder %s12, 2
      %p29 = por %p27, %p28
      %p30 = scmp.ne.s32.totalorder %s22, %s25
      %p31 = scmp.eq.s32.totalorder %s12, 0
      %p32 = por %p30, %p31
      %p33 = scmp.ne.s32.totalorder %s22, %s25
      %p34 = scmp.eq.s32.totalorder %s17, 2
      %p35 = por %p33, %p34
      %p36 = scmp.ne.s32.totalorder %s25, %s26
      %p37 = scmp.eq.s32.totalorder %s17, 0
      %p38 = por %p36, %p37
      %p39 = scmp.ne.s32.totalorder %s25, %s26
      %p40 = scmp.eq.s32.totalorder %s18, 2
      %p41 = por %p39, %p40
      %p43 = scmp.ne.s32.totalorder %s26, %s42
      %p44 = scmp.eq.s32.totalorder %s18, 0
      %p45 = por %p43, %p44
      %s47 = sadd.s32 %s46, 1
      %p50 = scmp.eq.s32.totalorder %s12, 2
      %p51 = scmp.ne.s32.totalorder %s46, %s48
      %p52 = scmp.eq.s32.totalorder %s12, 0
      %p53 = por %p51, %p52
      %p54 = scmp.ne.s32.totalorder %s46, %s48
      %p55 = scmp.eq.s32.totalorder %s17, 2
      %p56 = por %p54, %p55
      %p57 = scmp.ne.s32.totalorder %s48, %s49
      %p58 = scmp.eq.s32.totalorder %s17, 0
      %p59 = por %p57, %p58
      %p60 = scmp.ne.s32.totalorder %s48, %s49
      %p61 = scmp.eq.s32.totalorder %s18, 2
      %p62 = por %p60, %p61
      %p64 = scmp.ne.s32.totalorder %s49, %s63
      %p65 = scmp.eq.s32.totalorder %s18, 0
      %p66 = por %p64, %p65
      %s68 = sadd.s32 %s67, 1
      %p71 = scmp.eq.s32.totalorder %s12, 2
      %p72 = scmp.ne.s32.totalorder %s67, %s69
      %p73 = scmp.eq.s32.totalorder %s12, 0
      %p74 = por %p72, %p73
      %p75 = scmp.ne.s32.totalorder %s67, %s69
      %p76 = scmp.eq.s32.totalorder %s17, 2
      %p77 = por %p75, %p76
      %p78 = scmp.ne.s32.totalorder %s69, %s70
      %p79 = scmp.eq.s32.totalorder %s17, 0
      %p80 = por %p78, %p79
      %p81 = scmp.ne.s32.totalorder %s69, %s70
      %p82 = scmp.eq.s32.totalorder %s18, 2
      %p83 = por %p81, %p82
      %p85 = scmp.ne.s32.totalorder %s70, %s84
      %p86 = scmp.eq.s32.totalorder %s18, 0
      %p87 = por %p85, %p86
      %s88 = ssub.s32 %s12, %s19
      %p89 = scmp.eq.s32.totalorder %s88, 0
      %s91 = sadd.s32 %s90, 1
      %s92 = scalar_select %p89, %s90, %s91
      %p95 = pneg %p89
      %p96 = scmp.eq.s32.totalorder %s12, 2
      %p97 = por %p95, %p96
      %p98 = scmp.ne.s32.totalorder %s90, %s93
      %p99 = scmp.eq.s32.totalorder %s12, 0
      %p100 = por %p98, %p99
      %p101 = scmp.ne.s32.totalorder %s90, %s93
      %p102 = scmp.eq.s32.totalorder %s17, 2
      %p103 = por %p101, %p102
      %p104 = scmp.ne.s32.totalorder %s93, %s94
      %p105 = scmp.eq.s32.totalorder %s17, 0
      %p106 = por %p104, %p105
      %p107 = scmp.ne.s32.totalorder %s93, %s94
      %p108 = scmp.eq.s32.totalorder %s18, 2
      %p109 = por %p107, %p108
      %p111 = scmp.ne.s32.totalorder %s94, %s110
      %p112 = scmp.eq.s32.totalorder %s18, 0
      %p113 = por %p111, %p112
      %p114 = scmp.le.s32.totalorder 1, %s12
      %p115 = scmp.lt.s32.totalorder %s12, 4
      %p116 = pnand %p114, %p115
      %p117 = pneg %p116
      // Predicated region
      $region9: #{tpu_custom_call.1} parent=5 // pred_check
        _
      $region10: #{tpu_custom_call.1} parent=5 // pred_check_branch
        %119 = sbr.rel (%p116) target = $region12
      $region11: #{tpu_custom_call.1} parent=5 // pred_region
        %s120 = ssub.s32 %s12, 1
        // Predicated region
        $region13: #{tpu_custom_call.1} parent=11 // pred_check
          %p121 = pneg %p59
        $region14: #{tpu_custom_call.1} parent=11 // pred_check_branch
          %123 = sbr.rel (%p121) target = $region16
        $region15: #{tpu_custom_call.1} parent=11 // pred_region
          _
        $region16: #{tpu_custom_call.1} parent=11 // pred_fallthru
          _
        // Predicated region
        $region17: #{tpu_custom_call.1} parent=11 // pred_check
          %p124 = pneg %p80
        $region18: #{tpu_custom_call.1} parent=11 // pred_check_branch
          %126 = sbr.rel (%p124) target = $region20
        $region19: #{tpu_custom_call.1} parent=11 // pred_region
          _
        $region20: #{tpu_custom_call.1} parent=11 // pred_fallthru
          _
      $region12: #{tpu_custom_call.1} parent=5 // pred_fallthru
        _
      %p127 = scmp.lt.s32.totalorder %s12, 3
      // Predicated region
      $region21: #{tpu_custom_call.1} parent=5 // pred_check
        %p128 = pneg %p127
      $region22: #{tpu_custom_call.1} parent=5 // pred_check_branch
        %130 = sbr.rel (%p128) target = $region24
      $region23: #{tpu_custom_call.1} parent=5 // pred_region
        // Predicated region
        $region25: #{tpu_custom_call.1} parent=23 // pred_check
          %p131 = pneg %p32
        $region26: #{tpu_custom_call.1} parent=23 // pred_check_branch
          %133 = sbr.rel (%p131) target = $region28
        $region27: #{tpu_custom_call.1} parent=23 // pred_region
          %s134 = smul.u32 2, %s12
          %p135 = scmp.lt.s32.totalorder %s134, 5
          %s136 = scalar_select %p135, %s134, 5
          %s137 = smul.addr %s136, 4
          %s138 = scalar_lea.vmem %s0, %s137
          %s139 = smul.u32 2, %s12
        $region28: #{tpu_custom_call.1} parent=23 // pred_fallthru
          _
      $region24: #{tpu_custom_call.1} parent=5 // pred_fallthru
        _
      %p140 = scmp.le.s32.totalorder 1, %s12
      %p141 = scmp.lt.s32.totalorder %s12, 4
      %p142 = pnand %p140, %p141
      %p143 = pneg %p142
      // Predicated region
      $region29: #{tpu_custom_call.1} parent=5 // pred_check
        _
      $region30: #{tpu_custom_call.1} parent=5 // pred_check_branch
        %145 = sbr.rel (%p142) target = $region32
      $region31: #{tpu_custom_call.1} parent=5 // pred_region
        %s146 = ssub.s32 %s12, 1
        %s147 = smul.u32 2, %s17
        %p148 = scmp.lt.s32.totalorder %s147, 5
        %s149 = scalar_select %p148, %s147, 5
        %s150 = smul.addr %s149, 4
        %s151 = scalar_lea.vmem %s0, %s150
        %p152 = pneg %p38
        %p153 = pneg %p35
        %p154 = pneg %p59
        %p155 = pneg %p56
        %p156 = pneg %p80
        %p157 = pneg %p77
        %p158 = pneg %p106
        %p159 = pneg %p103
        %s160 = sand.u32 %s93, 1
        %s161 = scalar_lea.sflag [#allocation3], %s160
        %s162 = sand.u32 %s93, 1
        %s163 = scalar_lea.vmem [#allocation2], %s162
        %s164 = smul.u32 2, %s17
        %p165 = scmp.lt.s32.totalorder %s164, 5
        %s166 = scalar_select %p165, %s164, 5
        %s167 = smul.addr %s166, 4
        %s168 = scalar_lea.vmem %s0, %s167
        %s169 = smul.u32 2, %s17
        %v171 = vld [vmem:[%s168] sm:$0xf]
        %v172 = vld [vmem:[%s168 + $0x4] sm:$0xf]
        %v173 = vld [vmem:[%s1] sm:$0xf]
        %v174 = vld [vmem:[%s1 + $0x4] sm:$0xf]
        %v175 = vld [vmem:[%s1 + $0x8] sm:$0xf]
        %v176 = vld [vmem:[%s1 + $0xc] sm:$0xf]
        %v177 = vld [vmem:[%s2] sm:$0x1]
        %v179 = vlaneseq
        %v180 = vshrl.u32 %v179, 7
        %v181 = vsub.s32 0, %v180
        %v182 = vrot.slane %v177, %v181
        %v186 = vunpack.c.l.b16 %v171
        %v187 = vunpack.c.l.b16 %v172
        %v188 = vpack.c.b16 %v187, %v186
        %v193 = vunpack.c.l.b16 %v173
        %v194 = vunpack.c.l.b16 %v174
        %v195 = vunpack.c.l.b16 %v175
        %v196 = vunpack.c.l.b16 %v176
        %v197 = vpack.c.b16 %v194, %v193
        %v198 = vpack.c.b16 %v196, %v195
        %vm201 = vcmask 261120
        %v203 = vsel %vm201, %v188, 0
        %205 = vmatprep.subr.bf16.mxu0 0
        %206 = vmatpush1.bf16.msra.mxu0 %v197
        %207 = vmatprep.subr.bf16.mxu0 0
        %208 = vmatpush1.bf16.msra.mxu0 %v198
        %209 = vmatprep.subr.bf16.mxu0 0
        %210 = vmatpush1.bf16.msra.mxu0 0
        %211 = vmatprep.subr.bf16.mxu0 0
        %212 = vmatpush1.bf16.msra.mxu0 0
        %213 = vmatprep.subr.bf16.mxu0 0
        %214 = vmatpush1.bf16.msra.mxu0 0
        %215 = vmatprep.subr.bf16.mxu0 0
        %216 = vmatpush1.bf16.msra.mxu0 0
        %217 = vmatprep.subr.bf16.mxu0 0
        %218 = vmatpush1.bf16.msra.mxu0 0
        %219 = vmatprep.subr.bf16.mxu0 0
        %220 = vmatpush1.bf16.msra.mxu0 0
        %221 = vmatprep.subr.bf16.mxu0 0
        %222 = vmatpush1.bf16.msra.mxu0 0
        %223 = vmatprep.subr.bf16.mxu0 0
        %224 = vmatpush1.bf16.msra.mxu0 0
        %225 = vmatprep.subr.bf16.mxu0 0
        %226 = vmatpush1.bf16.msra.mxu0 0
        %227 = vmatprep.subr.bf16.mxu0 0
        %228 = vmatpush1.bf16.msra.mxu0 0
        %229 = vmatprep.subr.bf16.mxu0 0
        %230 = vmatpush1.bf16.msra.mxu0 0
        %231 = vmatprep.subr.bf16.mxu0 0
        %232 = vmatpush1.bf16.msra.mxu0 0
        %233 = vmatprep.subr.bf16.mxu0 0
        %234 = vmatpush1.bf16.msra.mxu0 0
        %235 = vmatprep.subr.bf16.mxu0 0
        %236 = vmatpush1.bf16.msra.mxu0 0
        %237 = vmatprep.mubr.bf16.mxu0 0
        %238 = vmatmul.mubr.bf16.gmra.mrb[0].mxu0 %v203
        %v239 = vpop.f32.mrb[0].mxu0
        %v240 = vadd.f32 %v182, %v239
        %v241 = vpop.f32.mrb[0].mxu0
        %v242 = vpop.f32.mrb[0].mxu0
        %v243 = vadd.f32 %v182, %v242
        %v244 = vpop.f32.mrb[0].mxu0
        %245 = vdwg.mxu0
        %v246 = vlaneseq
        %v247 = vand.u32 %v246, 127
        %vm248 = vcmp.lt.s32.totalorder %v247, 4
        %v249 = vsel %vm248, %v240, -1e+30
        %v250 = vsel %vm248, %v243, -1e+30
        %vm251 = vcmask 64512
        %v252 = vsel %vm251, %v249, -inf
        %253 = vmax.xlane.f32.xlu0 %v252
        %v254 = vpop.xlane.xlu0 %253
        %v255 = vsel %vm251, %v250, -inf
        %256 = vmax.xlane.f32.xlu0 %v255
        %v257 = vpop.xlane.xlu0 %256
        %vm258 = vcmp.eq.f32.partialorder %v249, %v254
        %vm259 = vcmp.eq.f32.partialorder %v250, %v257
        %v260 = vsel %vm258, %v247, 8
        %v261 = vsel %vm259, %v247, 8
        %v262 = vsel %vm251, %v260, 2147483647
        %v263 = vand.u32 %v262, 65535
        %v264 = vshra.s32 %v262, 16
        %v265 = vcvt.s32.f32 %v263
        %v266 = vcvt.s32.f32 %v264
        %267 = vmin.xlane.f32.xlu0 %v266
        %v268 = vpop.xlane.xlu0 %267
        %vm269 = vcmp.eq.f32.partialorder %v266, %v268
        %v270 = vsel %vm269, %v265, inf
        %271 = vmin.xlane.f32.xlu0 %v270
        %v272 = vpop.xlane.xlu0 %271
        %v273 = vcvt.f32.s32 %v272
        %v274 = vcvt.f32.s32 %v268
        %v275 = vshll.u32 %v274, 16
        %v276 = vadd.s32 %v275, %v273
        %v277 = vsel %vm251, %v261, 2147483647
        %v278 = vand.u32 %v277, 65535
        %v279 = vshra.s32 %v277, 16
        %v280 = vcvt.s32.f32 %v278
        %v281 = vcvt.s32.f32 %v279
        %282 = vmin.xlane.f32.xlu0 %v281
        %v283 = vpop.xlane.xlu0 %282
        %vm284 = vcmp.eq.f32.partialorder %v281, %v283
        %v285 = vsel %vm284, %v280, inf
        %286 = vmin.xlane.f32.xlu0 %v285
        %v287 = vpop.xlane.xlu0 %286
        %v288 = vcvt.f32.s32 %v287
        %v289 = vcvt.f32.s32 %v283
        %v290 = vshll.u32 %v289, 16
        %v291 = vadd.s32 %v290, %v288
        %vm292 = vcmp.eq.s32.totalorder %v247, 4
        %v293 = vcvt.s32.f32 %v276
        %v294 = vcvt.s32.f32 %v291
        %v295 = vsel %vm292, %v293, -1e+30
        %v296 = vsel %vm292, %v294, -1e+30
        %vm297 = vcmp.eq.s32.totalorder %v247, %v276
        %vm298 = vcmp.eq.s32.totalorder %v247, %v291
        %v299 = vsel %vm297, -1e+30, %v249
        %v300 = vsel %vm298, -1e+30, %v250
        %v301 = vsel %vm251, %v299, -inf
        %302 = vmax.xlane.f32.xlu0 %v301
        %v303 = vpop.xlane.xlu0 %302
        %v304 = vsel %vm251, %v300, -inf
        %305 = vmax.xlane.f32.xlu0 %v304
        %v306 = vpop.xlane.xlu0 %305
        %vm307 = vcmp.eq.f32.partialorder %v299, %v303
        %vm308 = vcmp.eq.f32.partialorder %v300, %v306
        %v309 = vsel %vm307, %v247, 8
        %v310 = vsel %vm308, %v247, 8
        %v311 = vsel %vm251, %v309, 2147483647
        %v312 = vand.u32 %v311, 65535
        %v313 = vshra.s32 %v311, 16
        %v314 = vcvt.s32.f32 %v312
        %v315 = vcvt.s32.f32 %v313
        %316 = vmin.xlane.f32.xlu0 %v315
        %v317 = vpop.xlane.xlu0 %316
        %vm318 = vcmp.eq.f32.partialorder %v315, %v317
        %v319 = vsel %vm318, %v314, inf
        %320 = vmin.xlane.f32.xlu0 %v319
        %v321 = vpop.xlane.xlu0 %320
        %v322 = vcvt.f32.s32 %v321
        %v323 = vcvt.f32.s32 %v317
        %v324 = vshll.u32 %v323, 16
        %v325 = vadd.s32 %v324, %v322
        %v326 = vsel %vm251, %v310, 2147483647
        %v327 = vand.u32 %v326, 65535
        %v328 = vshra.s32 %v326, 16
        %v329 = vcvt.s32.f32 %v327
        %v330 = vcvt.s32.f32 %v328
        %331 = vmin.xlane.f32.xlu0 %v330
        %v332 = vpop.xlane.xlu0 %331
        %vm333 = vcmp.eq.f32.partialorder %v330, %v332
        %v334 = vsel %vm333, %v329, inf
        %335 = vmin.xlane.f32.xlu0 %v334
        %v336 = vpop.xlane.xlu0 %335
        %v337 = vcvt.f32.s32 %v336
        %v338 = vcvt.f32.s32 %v332
        %v339 = vshll.u32 %v338, 16
        %v340 = vadd.s32 %v339, %v337
        %vm341 = vcmp.eq.s32.totalorder %v247, 5
        %v342 = vcvt.s32.f32 %v325
        %v343 = vcvt.s32.f32 %v340
        %v344 = vsel %vm341, %v342, %v295
        %v345 = vsel %vm341, %v343, %v296
        %v346 = vsel %vm251, %v344, -inf
        %347 = vmax.xlane.f32.xlu0 %v346
        %v348 = vpop.xlane.xlu0 %347
        %v349 = vsel %vm251, %v345, -inf
        %350 = vmax.xlane.f32.xlu0 %v349
        %v351 = vpop.xlane.xlu0 %350
        %v352 = vsub.f32 %v344, %v348
        %v353 = vsub.f32 %v345, %v351
        %v354 = vmul.f32 %v352, 1.442695
        %v355 = vpow.pop %v354
        %v356 = vmul.f32 %v353, 1.442695
        %v357 = vpow.pop %v356
        %v358 = vsel %vm251, %v355, 0.0
        %359 = vadd.xlane.f32.xlu0 %v358
        %v360 = vpop.xlane.xlu0 %359
        %v361 = vsel %vm251, %v357, 0.0
        %362 = vadd.xlane.f32.xlu0 %v361
        %v363 = vpop.xlane.xlu0 %362
        %v364 = vrcp.pop %v360
        %v365 = vrcp.pop %v363
        %v366 = vmul.f32 %v355, %v364
        %v367 = vmul.f32 %v357, %v365
        %v368 = vmul.f32 %v366, %v240
        %v369 = vmul.f32 %v367, %v243
        %v370 = vsel %vm251, %v368, 0.0
        %371 = vadd.xlane.f32.xlu0 %v370
        %v372 = vpop.xlane.xlu0 %371
        %v373 = vsel %vm251, %v369, 0.0
        %374 = vadd.xlane.f32.xlu0 %v373
        %v375 = vpop.xlane.xlu0 %374
        %v378 = vlaneseq
        %v379 = vshrl.u32 %v378, 7
        %v380 = vsub.s32 %v247, %v379
        %v381 = vrot.slane %v372, %v380
        %v382 = vadd.s32 %v247, 4294967288
        %v383 = vlaneseq
        %v384 = vshrl.u32 %v383, 7
        %v385 = vsub.s32 %v382, %v384
        %v386 = vrot.slane %v375, %v385
        %vm387 = vcmask 130112
        %v388 = vsel %vm387, %v386, %v381
        %vm390 = vcmask 122880
        %391 = vst.msk [vmem:[%s163] sm:$0x1] %vm390, %v388
        %s392 = sand.u32 %s93, 1
        %s393 = scalar_lea.sflag [#allocation3], %s392
        %s394 = sand.u32 %s93, 1
        %s395 = scalar_lea.vmem [#allocation2], %s394
        // Predicated region
        $region33: #{tpu_custom_call.1} parent=31 // pred_check
          %p396 = pneg %p103
        $region34: #{tpu_custom_call.1} parent=31 // pred_check_branch
          %398 = sbr.rel (%p396) target = $region36
        $region35: #{tpu_custom_call.1} parent=31 // pred_region
          %s400 = ssub.s32 16, 16
          %401 = vsyncadd %s393, %s400
          %s402 = smul.addr %s17, 16
          %s403 = scalar_lea.hbm %s3, %s402
          %s405 = sshll.u32 %s395, 4
          %s406 = int_to_ptr.vmem [resolvable:$true] %s405
          %408 = dma.vmem_to_hbm [thread:$0]  %s406, 16, %s403, %s393
        $region36: #{tpu_custom_call.1} parent=31 // pred_fallthru
          _
      $region32: #{tpu_custom_call.1} parent=5 // pred_fallthru
        _
      %p409 = scmp.le.s32.totalorder 2, %s12
      // Predicated region
      $region37: #{tpu_custom_call.1} parent=5 // pred_check
        %p410 = pneg %p409
      $region38: #{tpu_custom_call.1} parent=5 // pred_check_branch
        %412 = sbr.rel (%p410) target = $region40
      $region39: #{tpu_custom_call.1} parent=5 // pred_region
        %s413 = ssub.s32 %s12, 2
        // Predicated region
        $region41: #{tpu_custom_call.1} parent=39 // pred_check
          %p414 = pneg %p109
        $region42: #{tpu_custom_call.1} parent=39 // pred_check_branch
          %416 = sbr.rel (%p414) target = $region44
        $region43: #{tpu_custom_call.1} parent=39 // pred_region
          %s417 = sand.u32 %s94, 1
          %s418 = scalar_lea.sflag [#allocation3], %s417
          %s419 = sand.u32 %s94, 1
          %s420 = scalar_lea.vmem [#allocation2], %s419
          %421 = dma.done %s418, 16
        $region44: #{tpu_custom_call.1} parent=39 // pred_fallthru
          _
      $region40: #{tpu_custom_call.1} parent=5 // pred_fallthru
        _
    $region6: #{tpu_custom_call.1} parent=1 // loop_footer
      %s16 = sadd.s32 1, %s12
    $region7: #{tpu_custom_call.1} parent=1 // loop_footer_branch
      %11 = sbr.rel target = $region3
    $region8: #{tpu_custom_call.1} parent=1 // loop_exit
      _
    %422 = vsyncpa [#allocation3], 1
    %s423 = scalar_lea.sflag [#allocation3], 1
    %424 = vsyncpa %s423, 1

</llo_original>
